<compile_context>
chip_gen: v5e
topology: v5e:2x2
jax: 0.10.0
libtpu: 0.0.40
codegen_flags: <defaults>
</compile_context>

<pallas_src>
import functools

import jax
import jax.numpy as jnp
from jax.experimental import pallas as pl
from jax.experimental.pallas import tpu as pltpu


# ---------------------------------------------------------------------------
# 1) modulation kernel (runs once): SiLU(t) @ W^T + b  ->  (1 + scale), shift
# ---------------------------------------------------------------------------
def _modulation_kernel(t_ref, w_ref, b_ref, scale1_ref, shift_ref):
    C = t_ref.shape[-1]
    t = t_ref[...].astype(jnp.float32)
    # SiLU in f32 (EUP), then cast the tiny LHS to the weight's native dtype so
    # the MXU runs its fast path (bf16 weights stay bf16; f32 stays f32).
    silu_t = (t * jax.nn.sigmoid(t)).astype(w_ref.dtype)          # (B, C)
    # silu_t @ W^T without materializing a transposed weight: contract on the
    # last dims of both operands.  Result accumulates in f32.
    mod = jax.lax.dot_general(
        silu_t, w_ref[...],
        dimension_numbers=(((1,), (1,)), ((), ())),
        preferred_element_type=jnp.float32)                       # (B, 2C)
    mod = mod + b_ref[...].astype(jnp.float32)
    # chunk(2, dim=-1): scale is the FIRST half.  Fold the "+1" into scale so
    # the hot loop is exactly one mul + one add per element.
    scale1_ref[...] = mod[:, :C] + 1.0
    shift_ref[...] = mod[:, C:]


def _modulation(t, weight, bias2d):
    B, C = t.shape
    # VMEM budget sized from the real weight footprint (+ slack), so large C
    # does not trip the default scoped-VMEM limit (16 MiB v5e / 32 MiB v6e+).
    w_bytes = int(weight.size) * weight.dtype.itemsize
    vmem = max(16 << 20, min(w_bytes + (8 << 20), 128 << 20))
    return pl.pallas_call(
        _modulation_kernel,
        out_shape=(jax.ShapeDtypeStruct((B, C), jnp.float32),   # 1 + scale
                   jax.ShapeDtypeStruct((B, C), jnp.float32)),  # shift
        compiler_params=pltpu.CompilerParams(vmem_limit_bytes=int(vmem)),
    )(t, weight, bias2d)


# ---------------------------------------------------------------------------
# 2) main kernel: out = x * (1 + scale) + shift   (HBM-bandwidth bound)
# ---------------------------------------------------------------------------
def _modulate_kernel(x_ref, scale1_ref, shift_ref, o_ref):
    # x_ref / o_ref: (bb, tn, C);  scale1_ref / shift_ref: (bb, 1, C) f32.
    # FMA in f32 for parity with the reference; single cast to output dtype.
    x = x_ref[...].astype(jnp.float32)
    o_ref[...] = (x * scale1_ref[...] + shift_ref[...]).astype(o_ref.dtype)


def _pick_tiles(B, N, C, itemsize, target_bytes=4 << 20):
    """Pick (bb, tn): ~4 MiB lane-dense (bb, tn, C) tiles.

    If a full (N, C) slab per batch is already below the target, fold batch
    into the tile (bb > 1, tn = N) so per-step pipeline overhead stays small.
    Otherwise tile the sequence dim with tn a multiple of the sublane packing.
    """
    sub = max(8, 32 // max(1, itemsize))          # 8 f32 / 16 bf16 / 32 int8
    row_bytes = C * itemsize
    slab_bytes = N * row_bytes
    if slab_bytes >= target_bytes or B == 1:
        tn = max(sub, (target_bytes // max(1, row_bytes)) // sub * sub)
        tn = min(tn, N)                            # == N -> full extent, OK
        return 1, tn
    bb = max(1, min(B, target_bytes // max(1, slab_bytes)))
    return bb, N


@functools.partial(jax.jit, static_argnames=("tile_n", "tile_b"))
def adaln(x, t, weight, bias, tile_n=None, tile_b=None):
    """AdaLN forward.

    Args:
      x:      (B, N, C)
      t:      (B, C)
      weight: (2C, C)  torch nn.Linear(C, 2C) weight layout
      bias:   (2C,)
    """
    B, N, C = x.shape

    # Tiny modulation path, hoisted out of the hot loop (runs once).
    scale1, shift = _modulation(t, weight, bias.reshape(1, 2 * C))
    # Present (B, 1, C) so the per-batch blocks keep full-extent last-two dims.
    scale1 = scale1.reshape(B, 1, C)
    shift = shift.reshape(B, 1, C)

    if tile_n is not None or tile_b is not None:
        bb = int(tile_b) if tile_b is not None else 1
        tn = int(tile_n) if tile_n is not None else N
    else:
        bb, tn = _pick_tiles(B, N, C, x.dtype.itemsize)

    grid = (pl.cdiv(B, bb), pl.cdiv(N, tn))

    # VMEM limit derived from the working set: double-buffered in + out tiles,
    # the tiny resident scale/shift blocks, plus slack.
    tile_bytes = bb * tn * C * x.dtype.itemsize
    vmem = 4 * tile_bytes + 4 * bb * C * 4 + (4 << 20)
    vmem = max(16 << 20, min(int(vmem), 64 << 20))

    return pl.pallas_call(
        _modulate_kernel,
        out_shape=jax.ShapeDtypeStruct((B, N, C), x.dtype),
        grid_spec=pltpu.PrefetchScalarGridSpec(
            num_scalar_prefetch=0,
            grid=grid,
            in_specs=[
                pl.BlockSpec((bb, tn, C), lambda i, j: (i, j, 0)),   # x tile
                pl.BlockSpec((bb, 1, C), lambda i, j: (i, 0, 0)),    # 1+scale
                pl.BlockSpec((bb, 1, C), lambda i, j: (i, 0, 0)),    # shift
            ],
            out_specs=pl.BlockSpec((bb, tn, C), lambda i, j: (i, j, 0)),
        ),
        compiler_params=pltpu.CompilerParams(
            dimension_semantics=("parallel", "parallel"),
            vmem_limit_bytes=vmem,
        ),
    )(x, scale1, shift)


def adaln_reference(x, t, weight, bias):
    t32 = t.astype(jnp.float32)
    silu_t = t32 * jax.nn.sigmoid(t32)
    mod = silu_t @ weight.astype(jnp.float32).T + bias.astype(jnp.float32)
    C = x.shape[-1]
    scale, shift = mod[:, :C], mod[:, C:]
    out = x.astype(jnp.float32) * (1.0 + scale[:, None, :]) + shift[:, None, :]
    return out.astype(x.dtype)


if __name__ == "__main__":
    key = jax.random.PRNGKey(0)

    # --- Test 1: small shapes consistent with the module (B, N, C) / (B, C) ---
    # Default tiling folds batch (bb=B, tn=N) since the slab is tiny.
    B, N, C = 2, 8, 32
    kx, kt, kw, kb = jax.random.split(key, 4)
    x = jax.random.normal(kx, (B, N, C), dtype=jnp.float32)
    t = jax.random.normal(kt, (B, C), dtype=jnp.float32)
    # The torch module zero-inits the Linear (forward == identity); use small
    # random params so the SiLU + matmul + modulation path is exercised.
    weight = 0.02 * jax.random.normal(kw, (2 * C, C), dtype=jnp.float32)
    bias = 0.02 * jax.random.normal(kb, (2 * C,), dtype=jnp.float32)

    out = adaln(x, t, weight, bias)
    jax.block_until_ready(out)
    ref = adaln_reference(x, t, weight, bias)
    assert out.shape == (B, N, C) and out.dtype == x.dtype
    assert jnp.allclose(out, ref, atol=1e-5, rtol=1e-5), "mismatch vs reference"

    # Zero-init (as in the torch module) must be an exact identity.
    out_id = adaln(x, t, jnp.zeros_like(weight), jnp.zeros_like(bias))
    jax.block_until_ready(out_id)
    assert jnp.allclose(out_id, x, atol=1e-6, rtol=1e-6), "zero-init not identity"

    # --- Test 2: multi-tile path over the sequence dim (partial-tile safe) ---
    B2, N2, C2 = 2, 48, 128
    kx2, kt2, kw2, kb2 = jax.random.split(jax.random.PRNGKey(1), 4)
    x2 = jax.random.normal(kx2, (B2, N2, C2), dtype=jnp.float32)
    t2 = jax.random.normal(kt2, (B2, C2), dtype=jnp.float32)
    w2 = 0.02 * jax.random.normal(kw2, (2 * C2, C2), dtype=jnp.float32)
    b2 = 0.02 * jax.random.normal(kb2, (2 * C2,), dtype=jnp.float32)
    out2 = adaln(x2, t2, w2, b2, tile_n=16)                  # grid = (2, 3)
    jax.block_until_ready(out2)
    ref2 = adaln_reference(x2, t2, w2, b2)
    assert jnp.allclose(out2, ref2, atol=1e-5, rtol=1e-5), "tiled mismatch"

    # --- Test 3: bf16 inputs exercise the native-dtype MXU / f32-FMA path ---
    x3 = x2.astype(jnp.bfloat16)
    t3 = t2.astype(jnp.bfloat16)
    w3 = w2.astype(jnp.bfloat16)
    b3 = b2.astype(jnp.bfloat16)
    out3 = adaln(x3, t3, w3, b3)
    jax.block_until_ready(out3)
    ref3 = adaln_reference(x3, t3, w3, b3)
    assert out3.dtype == jnp.bfloat16
    assert jnp.allclose(out3.astype(jnp.float32), ref3.astype(jnp.float32),
                        atol=2e-2, rtol=2e-2), "bf16 mismatch"

    print("KERNEL_OK")
</pallas_src>

<mosaic_0001>
module attributes {stable_mosaic.version = 11 : i64} {
  func.func @_modulate_kernel(%arg0: i32, %arg1: i32, %arg2: memref<2x8x32xf32, #tpu.memory_space<vmem>>, %arg3: memref<2x1x32xf32, #tpu.memory_space<vmem>>, %arg4: memref<2x1x32xf32, #tpu.memory_space<vmem>>, %arg5: memref<2x8x32xf32, #tpu.memory_space<vmem>>) attributes {dimension_semantics = [#tpu.dimension_semantics<parallel>, #tpu.dimension_semantics<parallel>], iteration_bounds = array<i64: 1, 1>, scalar_prefetch = 0 : i64, scratch_operands = 0 : i64, tpu.core_type = #tpu.core_type<tc>, window_params = [{transform_indices = @transform_0, window_bounds = array<i64: 2, 8, 32>}, {transform_indices = @transform_1, window_bounds = array<i64: 2, 1, 32>}, {transform_indices = @transform_2, window_bounds = array<i64: 2, 1, 32>}, {transform_indices = @transform_3, window_bounds = array<i64: 2, 8, 32>}]} {
    %c0 = arith.constant 0 : index
    %c0_0 = arith.constant 0 : index
    %c0_1 = arith.constant 0 : index
    %0 = vector.load %arg2[%c0, %c0_0, %c0_1] : memref<2x8x32xf32, #tpu.memory_space<vmem>>, vector<2x8x32xf32>
    %c0_2 = arith.constant 0 : index
    %c0_3 = arith.constant 0 : index
    %c0_4 = arith.constant 0 : index
    %1 = vector.load %arg3[%c0_2, %c0_3, %c0_4] : memref<2x1x32xf32, #tpu.memory_space<vmem>>, vector<2x1x32xf32>
    %2 = vector.broadcast %1 : vector<2x1x32xf32> to vector<2x8x32xf32>
    %3 = arith.mulf %0, %2 : vector<2x8x32xf32>
    %c0_5 = arith.constant 0 : index
    %c0_6 = arith.constant 0 : index
    %c0_7 = arith.constant 0 : index
    %4 = vector.load %arg4[%c0_5, %c0_6, %c0_7] : memref<2x1x32xf32, #tpu.memory_space<vmem>>, vector<2x1x32xf32>
    %5 = vector.broadcast %4 : vector<2x1x32xf32> to vector<2x8x32xf32>
    %6 = arith.addf %3, %5 : vector<2x8x32xf32>
    %c0_8 = arith.constant 0 : index
    %c0_9 = arith.constant 0 : index
    %c0_10 = arith.constant 0 : index
    %7 = vector.load %arg5[%c0_8, %c0_9, %c0_10] : memref<2x8x32xf32, #tpu.memory_space<vmem>>, vector<2x8x32xf32>
    tpu.vector_store %arg5[%c0_8, %c0_9, %c0_10], %6 {strides = array<i32>} : memref<2x8x32xf32, #tpu.memory_space<vmem>>, vector<2x8x32xf32>,
    return
  }
  func.func @transform_0(%arg0: i32, %arg1: i32) -> (i32, i32, i32) {
    %c0_i32 = arith.constant 0 : i32
    %c0_i32_0 = arith.constant 0 : i32
    return %arg0, %arg1, %c0_i32 : i32, i32, i32
  }
  func.func @transform_1(%arg0: i32, %arg1: i32) -> (i32, i32, i32) {
    %c0_i32 = arith.constant 0 : i32
    %c0_i32_0 = arith.constant 0 : i32
    %c0_i32_1 = arith.constant 0 : i32
    return %arg0, %c0_i32, %c0_i32_0 : i32, i32, i32
  }
  func.func @transform_2(%arg0: i32, %arg1: i32) -> (i32, i32, i32) {
    %c0_i32 = arith.constant 0 : i32
    %c0_i32_0 = arith.constant 0 : i32
    %c0_i32_1 = arith.constant 0 : i32
    return %arg0, %c0_i32, %c0_i32_0 : i32, i32, i32
  }
  func.func @transform_3(%arg0: i32, %arg1: i32) -> (i32, i32, i32) {
    %c0_i32 = arith.constant 0 : i32
    %c0_i32_0 = arith.constant 0 : i32
    return %arg0, %arg1, %c0_i32 : i32, i32, i32
  }
}

module attributes {stable_mosaic.version = 11 : i64} {
  func.func @_modulation_kernel(%arg0: memref<2x32xf32, #tpu.memory_space<vmem>>, %arg1: memref<64x32xf32, #tpu.memory_space<vmem>>, %arg2: memref<1x64xf32, #tpu.memory_space<vmem>>, %arg3: memref<2x32xf32, #tpu.memory_space<vmem>>, %arg4: memref<2x32xf32, #tpu.memory_space<vmem>>) attributes {dimension_semantics = [], scalar_prefetch = 0 : i64, scratch_operands = 0 : i64, tpu.core_type = #tpu.core_type<tc>} {
    %c0 = arith.constant 0 : index
    %c0_0 = arith.constant 0 : index
    %0 = vector.load %arg0[%c0, %c0_0] : memref<2x32xf32, #tpu.memory_space<vmem>>, vector<2x32xf32>
    %1 = arith.negf %0 : vector<2x32xf32>
    %2 = math.exp %1 : vector<2x32xf32>
    %cst = arith.constant 1.000000e+00 : f32
    %3 = vector.broadcast %cst : f32 to vector<2x32xf32>
    %4 = arith.addf %3, %2 : vector<2x32xf32>
    %5 = arith.divf %3, %4 : vector<2x32xf32>
    %6 = arith.mulf %0, %5 : vector<2x32xf32>
    %c0_1 = arith.constant 0 : index
    %c0_2 = arith.constant 0 : index
    %7 = vector.load %arg1[%c0_1, %c0_2] : memref<64x32xf32, #tpu.memory_space<vmem>>, vector<64x32xf32>
    %cst_3 = arith.constant dense<0.000000e+00> : vector<2x64xf32>
    %8 = tpu.matmul %6, %7, %cst_3 {dimension_numbers = #tpu.dot_dimension_numbers<[1], [1], [0], [0], [0, 0, 1, 0], [], []>} : vector<2x32xf32>, vector<64x32xf32>, vector<2x64xf32> -> vector<2x64xf32>
    %c0_4 = arith.constant 0 : index
    %c0_5 = arith.constant 0 : index
    %9 = vector.load %arg2[%c0_4, %c0_5] : memref<1x64xf32, #tpu.memory_space<vmem>>, vector<1x64xf32>
    %10 = vector.broadcast %9 : vector<1x64xf32> to vector<2x64xf32>
    %11 = arith.addf %8, %10 : vector<2x64xf32>
    %12 = vector.extract_strided_slice %11 {offsets = [0, 0], sizes = [2, 32], strides = [1, 1]} : vector<2x64xf32> to vector<2x32xf32>
    %cst_6 = arith.constant 1.000000e+00 : f32
    %13 = vector.broadcast %cst_6 : f32 to vector<2x32xf32>
    %14 = arith.addf %12, %13 : vector<2x32xf32>
    %c0_7 = arith.constant 0 : index
    %c0_8 = arith.constant 0 : index
    %15 = vector.load %arg3[%c0_7, %c0_8] : memref<2x32xf32, #tpu.memory_space<vmem>>, vector<2x32xf32>
    tpu.vector_store %arg3[%c0_7, %c0_8], %14 {strides = array<i32>} : memref<2x32xf32, #tpu.memory_space<vmem>>, vector<2x32xf32>,
    %16 = vector.extract_strided_slice %11 {offsets = [0, 32], sizes = [2, 32], strides = [1, 1]} : vector<2x64xf32> to vector<2x32xf32>
    %c0_9 = arith.constant 0 : index
    %c0_10 = arith.constant 0 : index
    %17 = vector.load %arg4[%c0_9, %c0_10] : memref<2x32xf32, #tpu.memory_space<vmem>>, vector<2x32xf32>
    tpu.vector_store %arg4[%c0_9, %c0_10], %16 {strides = array<i32>} : memref<2x32xf32, #tpu.memory_space<vmem>>, vector<2x32xf32>,
    return
  }
}

</mosaic_0001>

<llo_original>
// kernel: adaln.3
$region0: #{adaln.3}
  #allocation0 [shape = 'u32[]', space=smem, size = 0x4, offset = 0x4, fixed_abs, tag = 'smem constant byte address 0x4 - core index']
  #allocation1 [shape = 'u32[72,128]{1,0:T(1,128)}', space=vmem, size = 0x9000, scoped, tag = 'internal scratch']
  %s0 = inlined_call_operand.vmem [shape: f32[2,8,32], index: 0, kind: input, shape index: {}]
  %s1 = inlined_call_operand.vmem [shape: f32[2,1,32], index: 1, kind: input, shape index: {}]
  %s2 = inlined_call_operand.vmem [shape: f32[2,1,32], index: 2, kind: input, shape index: {}]
  %s3 = inlined_call_operand.hbm [shape: f32[2,8,32], index: 3, kind: output, shape index: {}]
  %s4 = sld [smem:[#allocation0]]
  $region22: #{adaln.3} parent=0
    _
  %s6 = ssub.s32 1, %s4
  %s7 = scalar_select 0, %s6, %s4
  $region1: #{adaln.3} parent=0
    #allocation2 [shape = 'u8[8192]{0}', space=vmem, size = 0x2000, scoped, tag = 'output window, operand 0, single buffered']
    #allocation3 [shape = 's32[1]{0}', space=sflag, size = 0x4, scoped, tag = 'scoped memory for adaln.3']
    %8 = vsyncpa [#allocation3], 0
    // Predicated region
    $region2: #{adaln.3} parent=1 // pred_check
      _
    $region3: #{adaln.3} parent=1 // pred_check_branch
      %10 = sbr.rel (0) target = $region5
    $region4: #{adaln.3} parent=1 // pred_region
      _
    $region5: #{adaln.3} parent=1 // pred_fallthru
      _
    // Predicated region
    $region6: #{adaln.3} parent=1 // pred_check
      _
    $region7: #{adaln.3} parent=1 // pred_check_branch
      %12 = sbr.rel (0) target = $region9
    $region8: #{adaln.3} parent=1 // pred_region
      _
    $region9: #{adaln.3} parent=1 // pred_fallthru
      _
    // Predicated region
    $region10: #{adaln.3} parent=1 // pred_check
      _
    $region11: #{adaln.3} parent=1 // pred_check_branch
      %14 = sbr.rel (0) target = $region13
    $region12: #{adaln.3} parent=1 // pred_region
      _
    $region13: #{adaln.3} parent=1 // pred_fallthru
      _
    %v15 = vld [vmem:[%s0] sm:$0xff]
    %v16 = vld [vmem:[%s0 + $0x8] sm:$0xff]
    %v17 = vld [vmem:[%s1] sm:$0x1]
    %v18 = vld [vmem:[%s1 + $0x1] sm:$0x1]
    %v21 = vperm.slane %v17, 0
    %v22 = vperm.slane %v18, 0
    %v25 = vmul.f32 %v15, %v21
    %v26 = vmul.f32 %v16, %v22
    %v27 = vld [vmem:[%s2] sm:$0x1]
    %v28 = vld [vmem:[%s2 + $0x1] sm:$0x1]
    %v31 = vperm.slane %v27, 0
    %v32 = vperm.slane %v28, 0
    %v35 = vadd.f32 %v25, %v31
    %v36 = vadd.f32 %v26, %v32
    %vm37 = vcmask 261120
    %38 = vst.msk [vmem:[#allocation2] sm:$0xff] %vm37, %v35
    %39 = vst.msk [vmem:[#allocation2 + $0x8] sm:$0xff] %vm37, %v36
    // Predicated region
    $region14: #{adaln.3} parent=1 // pred_check
      _
    $region15: #{adaln.3} parent=1 // pred_check_branch
      %41 = sbr.rel (0) target = $region17
    $region16: #{adaln.3} parent=1 // pred_region
      %43 = vsyncadd [#allocation3], 0
      %s44 = sshll.u32 [#allocation2], 4
      %s45 = int_to_ptr.vmem [resolvable:$true] %s44
      %s46 = sshll.u32 %s3, 4
      %s47 = int_to_ptr.hbm [resolvable:$true] %s46
      %52 = dma.vmem_to_hbm [thread:$0]  %s45, 256, %s47, [#allocation3], 128, 128, 8
    $region17: #{adaln.3} parent=1 // pred_fallthru
      _
    // Predicated region
    $region18: #{adaln.3} parent=1 // pred_check
      _
    $region19: #{adaln.3} parent=1 // pred_check_branch
      %54 = sbr.rel (0) target = $region21
    $region20: #{adaln.3} parent=1 // pred_region
      %56 = dma.done [#allocation3], 256
    $region21: #{adaln.3} parent=1 // pred_fallthru
      _
    %57 = vsyncpa [#allocation3], 1

// kernel: adaln.2
$region0: #{adaln.2}
  #allocation0 [shape = 'u32[]', space=smem, size = 0x4, offset = 0x4, fixed_abs, tag = 'smem constant byte address 0x4 - core index']
  #allocation1 [shape = 'u32[72,128]{1,0:T(1,128)}', space=vmem, size = 0x9000, scoped, tag = 'internal scratch']
  %s0 = inlined_call_operand.vmem [shape: f32[2,32], index: 0, kind: input, shape index: {}]
  %s1 = inlined_call_operand.vmem [shape: f32[64,32], index: 1, kind: input, shape index: {}]
  %s2 = inlined_call_operand.vmem [shape: f32[1,64], index: 2, kind: input, shape index: {}]
  %s3 = inlined_call_operand.vmem [shape: f32[2,32], index: 3, kind: output, shape index: {0}]
  %s4 = inlined_call_operand.vmem [shape: f32[2,32], index: 4, kind: output, shape index: {1}]
  %5 = xla_tuple %s3, %s4
  %s6 = sld [smem:[#allocation0]]
  $region30: #{adaln.2} parent=0
    _
  %s8 = ssub.s32 1, %s6
  %s9 = scalar_select 0, %s8, %s6
  // Predicated region
  $region2: #{adaln.2} parent=0 // pred_check
    _
  $region3: #{adaln.2} parent=0 // pred_check_branch
    %11 = sbr.rel (0) target = $region5
  $region4: #{adaln.2} parent=0 // pred_region
    _
  $region5: #{adaln.2} parent=0 // pred_fallthru
    _
  // Predicated region
  $region6: #{adaln.2} parent=0 // pred_check
    _
  $region7: #{adaln.2} parent=0 // pred_check_branch
    %13 = sbr.rel (0) target = $region9
  $region8: #{adaln.2} parent=0 // pred_region
    _
  $region9: #{adaln.2} parent=0 // pred_fallthru
    _
  // Predicated region
  $region10: #{adaln.2} parent=0 // pred_check
    _
  $region11: #{adaln.2} parent=0 // pred_check_branch
    %15 = sbr.rel (0) target = $region13
  $region12: #{adaln.2} parent=0 // pred_region
    _
  $region13: #{adaln.2} parent=0 // pred_fallthru
    _
  %v16 = vld [vmem:[%s0] sm:$0x3]
  %v17 = vxor.u32 %v16, 2147483648
  %v18 = vmul.f32 %v17, 1.442695
  %v19 = vpow.pop %v18
  %v20 = vadd.f32 %v19, 1.0
  %v21 = vrcp.pop %v20
  %v22 = vmul.f32 %v20, %v21
  %v23 = vsub.f32 1.0, %v22
  %v24 = vmul.f32 %v21, %v23
  %v25 = vadd.f32 %v21, %v24
  %vm26 = vweird.f32 %v20
  %vm27 = vweird.f32 %v21
  %vm28 = vmor %vm26, %vm27
  %v29 = vsel %vm28, %v21, %v25
  %v30 = vand.u32 2147483647, %v20
  %vm31 = vcmp.eq.f32.partialorder %v30, 8.507059e+37
  %v32 = vand.u32 %v20, 2147483648
  %v33 = vor.u32 1.1754944e-38, %v32
  %v34 = vsel %vm31, %v33, %v29
  %v35 = vmul.f32 1.0, %v34
  %v36 = vmul.f32 %v16, %v35
  %v37 = vld [vmem:[%s1] sm:$0xff]
  %v38 = vld [vmem:[%s1 + $0x8] sm:$0xff]
  %v39 = vld [vmem:[%s1 + $0x10] sm:$0xff]
  %v40 = vld [vmem:[%s1 + $0x18] sm:$0xff]
  %v41 = vld [vmem:[%s1 + $0x20] sm:$0xff]
  %v42 = vld [vmem:[%s1 + $0x28] sm:$0xff]
  %v43 = vld [vmem:[%s1 + $0x30] sm:$0xff]
  %v44 = vld [vmem:[%s1 + $0x38] sm:$0xff]
  %v45 = vld [vmem:[%s2] sm:$0x1]
  %v47 = vperm.slane %v45, 0
  %vm49 = vcmask 261120
  %v51 = vsel %vm49, %v36, 0
  %v54 = vsel %vm49, %v37, 0
  %v57 = vsel %vm49, %v38, 0
  %v60 = vsel %vm49, %v39, 0
  %v63 = vsel %vm49, %v40, 0
  %v66 = vsel %vm49, %v41, 0
  %v69 = vsel %vm49, %v42, 0
  %v72 = vsel %vm49, %v43, 0
  %v75 = vsel %vm49, %v44, 0
  %77 = vmatpush.xpose.msra.mxu0 0.0
  %78 = vmatpush.xpose.msra.mxu0 0.0
  %79 = vmatpush.xpose.msra.mxu0 0.0
  %80 = vmatpush.xpose.msra.mxu0 0.0
  %81 = vmatpush.xpose.msra.mxu0 0.0
  %82 = vmatpush.xpose.msra.mxu0 0.0
  %83 = vmatpush.xpose.msra.mxu0 0.0
  %84 = vmatpush.xpose.msra.mxu0 0.0
  %85 = vmatpush.xpose.msra.mxu0 %v75
  %86 = vmatpush.xpose.msra.mxu0 %v72
  %87 = vmatpush.xpose.msra.mxu0 %v69
  %88 = vmatpush.xpose.msra.mxu0 %v66
  %89 = vmatpush.xpose.msra.mxu0 %v63
  %90 = vmatpush.xpose.msra.mxu0 %v60
  %91 = vmatpush.xpose.msra.mxu0 %v57
  %92 = vmatpush.xpose.msra.mxu0 %v54
  %93 = vmatmul.f32.gmra.mxu0 %v51
  %v94 = vpop.f32.mrf.mxu0
  %v95 = vadd.f32 %v47, %v94
  %96 = vdwg.mxu0
  %v97 = vadd.f32 %v95, 1.0
  %vm98 = vcmask 254976
  %99 = vst.msk [vmem:[%s3] sm:$0x3] %vm98, %v97
  %101 = vrot.lane.b32.xlu0 %v95, 96
  %v102 = vpop.permute.xlu0 %101
  %104 = vst.msk [vmem:[%s4] sm:$0x3] %vm98, %v102
  // Predicated region
  $region14: #{adaln.2} parent=0 // pred_check
    _
  $region15: #{adaln.2} parent=0 // pred_check_branch
    %106 = sbr.rel (0) target = $region17
  $region16: #{adaln.2} parent=0 // pred_region
    _
  $region17: #{adaln.2} parent=0 // pred_fallthru
    _
  // Predicated region
  $region18: #{adaln.2} parent=0 // pred_check
    _
  $region19: #{adaln.2} parent=0 // pred_check_branch
    %108 = sbr.rel (0) target = $region21
  $region20: #{adaln.2} parent=0 // pred_region
    _
  $region21: #{adaln.2} parent=0 // pred_fallthru
    _
  // Predicated region
  $region22: #{adaln.2} parent=0 // pred_check
    _
  $region23: #{adaln.2} parent=0 // pred_check_branch
    %110 = sbr.rel (0) target = $region25
  $region24: #{adaln.2} parent=0 // pred_region
    _
  $region25: #{adaln.2} parent=0 // pred_fallthru
    _
  // Predicated region
  $region26: #{adaln.2} parent=0 // pred_check
    _
  $region27: #{adaln.2} parent=0 // pred_check_branch
    %112 = sbr.rel (0) target = $region29
  $region28: #{adaln.2} parent=0 // pred_region
    _
  $region29: #{adaln.2} parent=0 // pred_fallthru
    _

</llo_original>
